<compile_context>
chip_gen: v7x
topology: tpu7x:2x2x1
jax: 0.10.0
libtpu: 0.0.40
codegen_flags: <defaults>
</compile_context>

<pallas_src>
import jax
import jax.numpy as jnp
from jax import lax
from jax.experimental import pallas as pl
from jax.experimental.pallas import tpu as pltpu


def _imputer_kernel(x_ref, w_ref, b_ref, o_ref):
    # x_ref : [TM, K]  activation tile
    # w_ref : [N, K]   weight in torch layout (resident across the grid)
    # b_ref : [1, N]   bias row vector (resident across the grid)
    # o_ref : [TM, N]  output tile
    acc = lax.dot_general(
        x_ref[...],
        w_ref[...],
        dimension_numbers=(((1,), (1,)), ((), ())),  # contract K of x with K of w
        preferred_element_type=jnp.float32,
    )
    o_ref[...] = (acc + b_ref[...]).astype(o_ref.dtype)


def imputer_forward(landmark, weight, bias, *, tm=1024):
    """y = landmark @ weight.T + bias via a tiled, pipelined Pallas TPU kernel.

    landmark: (..., target_dim) float32
    weight  : (impute_dim, target_dim) float32   (torch nn.Linear layout)
    bias    : (impute_dim,) float32
    returns : (..., impute_dim) float32
    """
    *lead, k = landmark.shape
    n = weight.shape[0]
    assert weight.shape == (n, k)
    assert bias.shape == (n,)

    m = 1
    for d in lead:
        m *= d
    x2d = landmark.reshape(m, k)
    b2d = bias.reshape(1, n)

    # Tile size along M:
    #  - if M fits in one tile, use the full extent (block == full dim satisfies
    #    the (8, 128) rule for any M);
    #  - otherwise use a multiple-of-8 tile and let Pallas mask the overhanging
    #    last block (grid uses cdiv).
    if m <= tm:
        tm_eff = m
    else:
        tm_eff = tm  # 1024: multiple of 8; x tile 128 KiB, out tile 256 KiB at
        # K=32 / N=64 -> double-buffered well under every scoped-VMEM default.
    grid_m = pl.cdiv(m, tm_eff)

    cost = pl.CostEstimate(
        flops=2 * m * k * n,
        transcendentals=0,
        bytes_accessed=4 * (m * k + k * n + n + m * n),
    )

    out2d = pl.pallas_call(
        _imputer_kernel,
        out_shape=jax.ShapeDtypeStruct((m, n), landmark.dtype),
        grid_spec=pltpu.PrefetchScalarGridSpec(
            num_scalar_prefetch=0,
            grid=(grid_m,),
            in_specs=[
                pl.BlockSpec((tm_eff, k), lambda i: (i, 0)),   # streamed x tile
                pl.BlockSpec((n, k), lambda i: (0, 0)),        # resident weight
                pl.BlockSpec((1, n), lambda i: (0, 0)),        # resident bias
            ],
            out_specs=pl.BlockSpec((tm_eff, n), lambda i: (i, 0)),
        ),
        compiler_params=pltpu.CompilerParams(
            dimension_semantics=("parallel",),  # shard M across TCs on v7x
        ),
        cost_estimate=cost,
    )(x2d, weight, b2d)

    return out2d.reshape(*lead, n)


if __name__ == "__main__":
    # Small deterministic setup consistent with the module:
    #   target_dim=32, impute_dim=64, landmark: (batch=2, seq=8, target_dim)
    target_dim = 32
    impute_dim = 64
    batch, seq = 2, 8

    key = jax.random.PRNGKey(0)
    k_x, k_w, k_b = jax.random.split(key, 3)

    landmark = jax.random.normal(k_x, (batch, seq, target_dim), dtype=jnp.float32)

    # Deterministic parameter init mimicking nn.Linear's uniform(-1/sqrt(K), 1/sqrt(K))
    bound = 1.0 / (target_dim ** 0.5)
    weight = jax.random.uniform(
        k_w, (impute_dim, target_dim), dtype=jnp.float32, minval=-bound, maxval=bound
    )
    bias = jax.random.uniform(
        k_b, (impute_dim,), dtype=jnp.float32, minval=-bound, maxval=bound
    )

    out = imputer_forward(landmark, weight, bias)
    out = jax.block_until_ready(out)

    # Reference check against plain JAX (same semantics as torch.nn.Linear)
    ref = landmark @ weight.T + bias
    assert out.shape == (batch, seq, impute_dim)
    assert jnp.allclose(out, ref, atol=1e-5, rtol=1e-5)

    print("KERNEL_OK")
</pallas_src>

<mosaic_0001>
module attributes {stable_mosaic.version = 11 : i64} {
  func.func @_imputer_kernel(%arg0: i32, %arg1: memref<16x32xf32, #tpu.memory_space<vmem>>, %arg2: memref<64x32xf32, #tpu.memory_space<vmem>>, %arg3: memref<1x64xf32, #tpu.memory_space<vmem>>, %arg4: memref<16x64xf32, #tpu.memory_space<vmem>>) attributes {dimension_semantics = [#tpu.dimension_semantics<parallel>], iteration_bounds = array<i64: 1>, scalar_prefetch = 0 : i64, scratch_operands = 0 : i64, tpu.core_type = #tpu.core_type<tc>, window_params = [{transform_indices = @transform_0, window_bounds = array<i64: 16, 32>}, {pipeline_mode = #tpu.pipeline_mode<synchronous>, transform_indices = @transform_1, window_bounds = array<i64: 64, 32>}, {pipeline_mode = #tpu.pipeline_mode<synchronous>, transform_indices = @transform_2, window_bounds = array<i64: 1, 64>}, {transform_indices = @transform_3, window_bounds = array<i64: 16, 64>}]} {
    %c0 = arith.constant 0 : index
    %c0_0 = arith.constant 0 : index
    %0 = vector.load %arg1[%c0, %c0_0] : memref<16x32xf32, #tpu.memory_space<vmem>>, vector<16x32xf32>
    %c0_1 = arith.constant 0 : index
    %c0_2 = arith.constant 0 : index
    %1 = vector.load %arg2[%c0_1, %c0_2] : memref<64x32xf32, #tpu.memory_space<vmem>>, vector<64x32xf32>
    %cst = arith.constant dense<0.000000e+00> : vector<16x64xf32>
    %2 = tpu.matmul %0, %1, %cst {dimension_numbers = #tpu.dot_dimension_numbers<[1], [1], [0], [0], [0, 0, 1, 0], [], []>} : vector<16x32xf32>, vector<64x32xf32>, vector<16x64xf32> -> vector<16x64xf32>
    %c0_3 = arith.constant 0 : index
    %c0_4 = arith.constant 0 : index
    %3 = vector.load %arg3[%c0_3, %c0_4] : memref<1x64xf32, #tpu.memory_space<vmem>>, vector<1x64xf32>
    %4 = vector.broadcast %3 : vector<1x64xf32> to vector<16x64xf32>
    %5 = arith.addf %2, %4 : vector<16x64xf32>
    %c0_5 = arith.constant 0 : index
    %c0_6 = arith.constant 0 : index
    %6 = vector.load %arg4[%c0_5, %c0_6] : memref<16x64xf32, #tpu.memory_space<vmem>>, vector<16x64xf32>
    tpu.vector_store %arg4[%c0_5, %c0_6], %5 {strides = array<i32>} : memref<16x64xf32, #tpu.memory_space<vmem>>, vector<16x64xf32>,
    return
  }
  func.func @transform_0(%arg0: i32) -> (i32, i32) {
    %c0_i32 = arith.constant 0 : i32
    %c0_i32_0 = arith.constant 0 : i32
    return %arg0, %c0_i32 : i32, i32
  }
  func.func @transform_1(%arg0: i32) -> (i32, i32) {
    %c0_i32 = arith.constant 0 : i32
    %c0_i32_0 = arith.constant 0 : i32
    %c0_i32_1 = arith.constant 0 : i32
    return %c0_i32, %c0_i32_0 : i32, i32
  }
  func.func @transform_2(%arg0: i32) -> (i32, i32) {
    %c0_i32 = arith.constant 0 : i32
    %c0_i32_0 = arith.constant 0 : i32
    %c0_i32_1 = arith.constant 0 : i32
    return %c0_i32, %c0_i32_0 : i32, i32
  }
  func.func @transform_3(%arg0: i32) -> (i32, i32) {
    %c0_i32 = arith.constant 0 : i32
    %c0_i32_0 = arith.constant 0 : i32
    return %arg0, %c0_i32 : i32, i32
  }
}

</mosaic_0001>

<llo_original>
// kernel: tpu_custom_call.1
$region0: #{tpu_custom_call.1}
  #allocation0 [shape = 'u32[]', space=smem, size = 0x4, offset = 0x4, fixed_abs, tag = 'smem constant byte address 0x4 - core index']
  #allocation1 [shape = 'u32[144,128]{1,0:T(1,128)}', space=vmem, size = 0x12000, scoped, tag = 'internal scratch']
  %s0 = inlined_call_operand.vmem [shape: f32[16,32], index: 0, kind: input, shape index: {}]
  %s1 = inlined_call_operand.vmem [shape: f32[64,32], index: 1, kind: input, shape index: {}]
  %s2 = inlined_call_operand.vmem [shape: f32[1,64], index: 2, kind: input, shape index: {}]
  %s3 = inlined_call_operand.hbm [shape: f32[16,64], index: 3, kind: output, shape index: {}]
  %s4 = sld [smem:[#allocation0]]
  $region22: #{tpu_custom_call.1} parent=0
    _
  %s6 = ssub.s32 1, %s4
  %s7 = scalar_select 0, %s6, %s4
  $region1: #{tpu_custom_call.1} parent=0
    #allocation2 [shape = 'u8[8192]{0}', space=vmem, size = 0x2000, scoped, tag = 'output window, operand 0, single buffered']
    #allocation3 [shape = 's32[1]{0}', space=sflag, size = 0x4, scoped, tag = 'scoped memory for tpu_custom_call.1']
    %8 = vsyncpa [#allocation3], 0
    // Predicated region
    $region2: #{tpu_custom_call.1} parent=1 // pred_check
      _
    $region3: #{tpu_custom_call.1} parent=1 // pred_check_branch
      %10 = sbr.rel (0) target = $region5
    $region4: #{tpu_custom_call.1} parent=1 // pred_region
      _
    $region5: #{tpu_custom_call.1} parent=1 // pred_fallthru
      _
    // Predicated region
    $region6: #{tpu_custom_call.1} parent=1 // pred_check
      _
    $region7: #{tpu_custom_call.1} parent=1 // pred_check_branch
      %12 = sbr.rel (0) target = $region9
    $region8: #{tpu_custom_call.1} parent=1 // pred_region
      _
    $region9: #{tpu_custom_call.1} parent=1 // pred_fallthru
      _
    // Predicated region
    $region10: #{tpu_custom_call.1} parent=1 // pred_check
      _
    $region11: #{tpu_custom_call.1} parent=1 // pred_check_branch
      %14 = sbr.rel (0) target = $region13
    $region12: #{tpu_custom_call.1} parent=1 // pred_region
      _
    $region13: #{tpu_custom_call.1} parent=1 // pred_fallthru
      _
    %v15 = vld [vmem:[%s0] sm:$0xff]
    %v16 = vld [vmem:[%s0 + $0x8] sm:$0xff]
    %v17 = vld [vmem:[%s1] sm:$0xff]
    %v18 = vld [vmem:[%s1 + $0x8] sm:$0xff]
    %v19 = vld [vmem:[%s1 + $0x10] sm:$0xff]
    %v20 = vld [vmem:[%s1 + $0x18] sm:$0xff]
    %v21 = vld [vmem:[%s1 + $0x20] sm:$0xff]
    %v22 = vld [vmem:[%s1 + $0x28] sm:$0xff]
    %v23 = vld [vmem:[%s1 + $0x30] sm:$0xff]
    %v24 = vld [vmem:[%s1 + $0x38] sm:$0xff]
    %v25 = vld [vmem:[%s2] sm:$0x1]
    %v27 = vlaneseq
    %v28 = vshrl.u32 %v27, 7
    %v29 = vsub.s32 0, %v28
    %v30 = vrot.slane %v25, %v29
    %vm32 = vcmask 261120
    %v34 = vsel %vm32, %v15, 0
    %v37 = vsel %vm32, %v16, 0
    %v40 = vsel %vm32, %v17, 0
    %v43 = vsel %vm32, %v18, 0
    %v46 = vsel %vm32, %v19, 0
    %v49 = vsel %vm32, %v20, 0
    %v52 = vsel %vm32, %v21, 0
    %v55 = vsel %vm32, %v22, 0
    %v58 = vsel %vm32, %v23, 0
    %v61 = vsel %vm32, %v24, 0
    %63 = vmatprep.subr.mxu0 0.0
    %64 = vmatpush1.xpose.msra.mxu0 %v40
    %65 = vmatprep.subr.mxu0 0.0
    %66 = vmatpush1.xpose.msra.mxu0 %v43
    %67 = vmatprep.subr.mxu0 0.0
    %68 = vmatpush1.xpose.msra.mxu0 %v46
    %69 = vmatprep.subr.mxu0 0.0
    %70 = vmatpush1.xpose.msra.mxu0 %v49
    %71 = vmatprep.subr.mxu0 0.0
    %72 = vmatpush1.xpose.msra.mxu0 %v52
    %73 = vmatprep.subr.mxu0 0.0
    %74 = vmatpush1.xpose.msra.mxu0 %v55
    %75 = vmatprep.subr.mxu0 0.0
    %76 = vmatpush1.xpose.msra.mxu0 %v58
    %77 = vmatprep.subr.mxu0 0.0
    %78 = vmatpush1.xpose.msra.mxu0 %v61
    %79 = vmatprep.subr.mxu0 0.0
    %80 = vmatpush1.xpose.msra.mxu0 0.0
    %81 = vmatprep.subr.mxu0 0.0
    %82 = vmatpush1.xpose.msra.mxu0 0.0
    %83 = vmatprep.subr.mxu0 0.0
    %84 = vmatpush1.xpose.msra.mxu0 0.0
    %85 = vmatprep.subr.mxu0 0.0
    %86 = vmatpush1.xpose.msra.mxu0 0.0
    %87 = vmatprep.subr.mxu0 0.0
    %88 = vmatpush1.xpose.msra.mxu0 0.0
    %89 = vmatprep.subr.mxu0 0.0
    %90 = vmatpush1.xpose.msra.mxu0 0.0
    %91 = vmatprep.subr.mxu0 0.0
    %92 = vmatpush1.xpose.msra.mxu0 0.0
    %93 = vmatprep.subr.mxu0 0.0
    %94 = vmatpush1.xpose.msra.mxu0 0.0
    %95 = vmatprep.subr.mxu0 0.0
    %96 = vmatpush1.xpose.msra.mxu0 0.0
    %97 = vmatprep.subr.mxu0 0.0
    %98 = vmatpush1.xpose.msra.mxu0 0.0
    %99 = vmatprep.subr.mxu0 0.0
    %100 = vmatpush1.xpose.msra.mxu0 0.0
    %101 = vmatprep.subr.mxu0 0.0
    %102 = vmatpush1.xpose.msra.mxu0 0.0
    %103 = vmatprep.subr.mxu0 0.0
    %104 = vmatpush1.xpose.msra.mxu0 0.0
    %105 = vmatprep.subr.mxu0 0.0
    %106 = vmatpush1.xpose.msra.mxu0 0.0
    %107 = vmatprep.subr.mxu0 0.0
    %108 = vmatpush1.xpose.msra.mxu0 0.0
    %109 = vmatprep.subr.mxu0 0.0
    %110 = vmatpush1.xpose.msra.mxu0 0.0
    %111 = vmatprep.subr.mxu0 0.0
    %112 = vmatpush1.xpose.msra.mxu0 0.0
    %113 = vmatprep.subr.mxu0 0.0
    %114 = vmatpush1.xpose.msra.mxu0 0.0
    %115 = vmatprep.subr.mxu0 0.0
    %116 = vmatpush1.xpose.msra.mxu0 0.0
    %117 = vmatprep.subr.mxu0 0.0
    %118 = vmatpush1.xpose.msra.mxu0 0.0
    %119 = vmatprep.subr.mxu0 0.0
    %120 = vmatpush1.xpose.msra.mxu0 0.0
    %121 = vmatprep.subr.mxu0 0.0
    %122 = vmatpush1.xpose.msra.mxu0 0.0
    %123 = vmatprep.subr.mxu0 0.0
    %124 = vmatpush1.xpose.msra.mxu0 0.0
    %125 = vmatprep.subr.mxu0 0.0
    %126 = vmatpush1.xpose.msra.mxu0 0.0
    %127 = vmatprep.mubr.f32.mxu0 0.0
    %128 = vmatmul.mubr.f32.gmra.mrb[0].mxu0 %v34
    %v129 = vpop.f32.mrb[0].mxu0
    %v130 = vadd.f32 %v30, %v129
    %v131 = vpop.f32.mrb[0].mxu0
    %132 = vmatprep.mubr.f32.mxu0 0.0
    %133 = vmatmul.mubr.f32.gmra.mrb[0].mxu0 %v37
    %v134 = vpop.f32.mrb[0].mxu0
    %v135 = vadd.f32 %v30, %v134
    %v136 = vpop.f32.mrb[0].mxu0
    %137 = vdwg.mxu0
    %vm138 = vcmask 523264
    %139 = vst.msk [vmem:[#allocation2] sm:$0xff] %vm138, %v130
    %140 = vst.msk [vmem:[#allocation2 + $0x8] sm:$0xff] %vm138, %v135
    // Predicated region
    $region14: #{tpu_custom_call.1} parent=1 // pred_check
      _
    $region15: #{tpu_custom_call.1} parent=1 // pred_check_branch
      %142 = sbr.rel (0) target = $region17
    $region16: #{tpu_custom_call.1} parent=1 // pred_region
      %s144 = ssub.s32 256, 256
      %145 = vsyncadd [#allocation3], %s144
      %s146 = sshll.u32 [#allocation2], 4
      %s147 = int_to_ptr.vmem [resolvable:$true] %s146
      %152 = dma.vmem_to_hbm [thread:$0]  %s147, 256, %s3, [#allocation3], 128, 128, 8
    $region17: #{tpu_custom_call.1} parent=1 // pred_fallthru
      _
    // Predicated region
    $region18: #{tpu_custom_call.1} parent=1 // pred_check
      _
    $region19: #{tpu_custom_call.1} parent=1 // pred_check_branch
      %154 = sbr.rel (0) target = $region21
    $region20: #{tpu_custom_call.1} parent=1 // pred_region
      %155 = dma.done [#allocation3], 256
    $region21: #{tpu_custom_call.1} parent=1 // pred_fallthru
      _
    %156 = vsyncpa [#allocation3], 1

</llo_original>
